<compile_context>
chip_gen: v5e
topology: v5e:2x2
jax: 0.10.0
libtpu: 0.0.40
codegen_flags: <defaults>
</compile_context>

<pallas_src>
import functools

import jax
import jax.numpy as jnp
from jax import lax
from jax.experimental import pallas as pl
from jax.experimental.pallas import tpu as pltpu


def _moving_avg_kernel(x_ref, o_ref, xpad_ref, *, kernel_size, stride, pad,
                       seq_len, l_out):
    # x_ref:    (L,     TN) VMEM tile of the *unpadded* input (lane-dense)
    # o_ref:    (L_out, TN) VMEM output tile
    # xpad_ref: (L_pad, TN) VMEM scratch holding the edge-replicated tile
    tn = x_ref.shape[1]

    # --- Fused edge-replication padding (VMEM-local, no extra HBM pass) ---
    xpad_ref[pl.ds(pad, seq_len), :] = x_ref[...]
    if pad > 0:
        first = x_ref[pl.ds(0, 1), :]
        last = x_ref[pl.ds(seq_len - 1, 1), :]
        xpad_ref[pl.ds(0, pad), :] = jnp.broadcast_to(first, (pad, tn))
        xpad_ref[pl.ds(pad + seq_len, pad), :] = jnp.broadcast_to(last, (pad, tn))

    # --- Sliding-window sum: contiguous ref-slice reads, f32 accumulation ---
    span = (l_out - 1) * stride + 1
    acc = xpad_ref[pl.ds(0, span), :].astype(jnp.float32)
    for k in range(1, kernel_size):
        acc = acc + xpad_ref[pl.ds(k, span), :].astype(jnp.float32)

    # For stride > 1, decimate once (single strided op instead of K of them).
    if stride > 1:
        acc = lax.slice(acc, (0, 0), (span, tn), (stride, 1))

    o_ref[...] = (acc * jnp.float32(1.0 / kernel_size)).astype(o_ref.dtype)


def moving_avg(x, kernel_size, stride):
    """x: (B, L, C) -> (B, L_out, C), matching the PyTorch module."""
    B, L, C = x.shape
    pad = (kernel_size - 1) // 2
    L_pad = L + 2 * pad
    L_out = (L_pad - kernel_size) // stride + 1
    N = B * C

    # Lane-dense re-layout: channels/batch on the 128-lane axis, time on
    # sublanes.  Layout plumbing only; the reduction stays in the kernel.
    xt = jnp.transpose(x, (1, 0, 2)).reshape(L, N)

    # Lane-tile size from a VMEM budget that also fits v7x (64 MiB physical).
    span = (L_out - 1) * stride + 1
    bytes_per_lane = 4 * (2 * L + 2 * L_out + L_pad + span)  # dbl-buf in/out + scratch + acc
    lane_budget = 24 * 1024 * 1024
    tn_cap = max(128, (lane_budget // bytes_per_lane) // 128 * 128)
    tn = N if N <= tn_cap else tn_cap
    grid = (pl.cdiv(N, tn),)

    kernel = functools.partial(
        _moving_avg_kernel,
        kernel_size=kernel_size,
        stride=stride,
        pad=pad,
        seq_len=L,
        l_out=L_out,
    )

    out_t = pl.pallas_call(
        kernel,
        out_shape=jax.ShapeDtypeStruct((L_out, N), x.dtype),
        grid_spec=pltpu.PrefetchScalarGridSpec(
            num_scalar_prefetch=0,
            grid=grid,
            in_specs=[pl.BlockSpec((L, tn), lambda j: (0, j))],
            out_specs=pl.BlockSpec((L_out, tn), lambda j: (0, j)),
            scratch_shapes=[pltpu.VMEM((L_pad, tn), x.dtype)],
        ),
        compiler_params=pltpu.CompilerParams(
            dimension_semantics=("parallel",),
            vmem_limit_bytes=48 * 1024 * 1024,
        ),
    )(xt)

    # Back to the PyTorch output layout.
    return jnp.transpose(out_t.reshape(L_out, B, C), (1, 0, 2))


def _reference_moving_avg(x, kernel_size, stride):
    pad = (kernel_size - 1) // 2
    front = jnp.repeat(x[:, 0:1, :], pad, axis=1)
    end = jnp.repeat(x[:, -1:, :], pad, axis=1)
    xp = jnp.concatenate([front, x, end], axis=1)
    L_pad = xp.shape[1]
    L_out = (L_pad - kernel_size) // stride + 1
    outs = [
        jnp.mean(xp[:, t * stride:t * stride + kernel_size, :], axis=1)
        for t in range(L_out)
    ]
    return jnp.stack(outs, axis=1)


if __name__ == "__main__":
    key = jax.random.PRNGKey(0)
    B, L, C = 2, 8, 16
    x = jax.random.normal(key, (B, L, C), dtype=jnp.float32)

    # Exercise both the common DLinear config (odd K, stride 1) and an
    # even-K / strided config.
    for kernel_size, stride in [(5, 1), (4, 2)]:
        out = jax.block_until_ready(moving_avg(x, kernel_size, stride))
        ref = _reference_moving_avg(x, kernel_size, stride)
        assert out.shape == ref.shape, (out.shape, ref.shape)
        assert jnp.allclose(out, ref, atol=1e-5, rtol=1e-5), (
            f"mismatch vs reference (kernel_size={kernel_size}, stride={stride})"
        )

    print("KERNEL_OK")
</pallas_src>

<mosaic_0001>
module attributes {stable_mosaic.version = 11 : i64} {
  func.func @_moving_avg_kernel(%arg0: i32, %arg1: memref<8x32xf32, #tpu.memory_space<vmem>>, %arg2: memref<8x32xf32, #tpu.memory_space<vmem>>, %arg3: memref<12x32xf32, #tpu.memory_space<vmem>>) attributes {dimension_semantics = [#tpu.dimension_semantics<parallel>], iteration_bounds = array<i64: 1>, scalar_prefetch = 0 : i64, scratch_operands = 1 : i64, tpu.core_type = #tpu.core_type<tc>, window_params = [{transform_indices = @transform_0, window_bounds = array<i64: 8, 32>}, {transform_indices = @transform_1, window_bounds = array<i64: 8, 32>}]} {
    %c0 = arith.constant 0 : index
    %c0_0 = arith.constant 0 : index
    %0 = vector.load %arg1[%c0, %c0_0] : memref<8x32xf32, #tpu.memory_space<vmem>>, vector<8x32xf32>
    %c2 = arith.constant 2 : index
    %c0_1 = arith.constant 0 : index
    %1 = vector.load %arg3[%c2, %c0_1] : memref<12x32xf32, #tpu.memory_space<vmem>>, vector<8x32xf32>
    tpu.vector_store %arg3[%c2, %c0_1], %0 {strides = array<i32>} : memref<12x32xf32, #tpu.memory_space<vmem>>, vector<8x32xf32>,
    %c0_2 = arith.constant 0 : index
    %c0_3 = arith.constant 0 : index
    %2 = vector.load %arg1[%c0_2, %c0_3] : memref<8x32xf32, #tpu.memory_space<vmem>>, vector<1x32xf32>
    %c7 = arith.constant 7 : index
    %c0_4 = arith.constant 0 : index
    %3 = vector.load %arg1[%c7, %c0_4] : memref<8x32xf32, #tpu.memory_space<vmem>>, vector<1x32xf32>
    %4 = vector.shape_cast %2 : vector<1x32xf32> to vector<1x32xf32>
    %5 = vector.broadcast %4 : vector<1x32xf32> to vector<2x32xf32>
    %c0_5 = arith.constant 0 : index
    %c0_6 = arith.constant 0 : index
    %6 = vector.load %arg3[%c0_5, %c0_6] : memref<12x32xf32, #tpu.memory_space<vmem>>, vector<2x32xf32>
    tpu.vector_store %arg3[%c0_5, %c0_6], %5 {strides = array<i32>} : memref<12x32xf32, #tpu.memory_space<vmem>>, vector<2x32xf32>,
    %7 = vector.shape_cast %3 : vector<1x32xf32> to vector<1x32xf32>
    %8 = vector.broadcast %7 : vector<1x32xf32> to vector<2x32xf32>
    %c10 = arith.constant 10 : index
    %c0_7 = arith.constant 0 : index
    %9 = vector.load %arg3[%c10, %c0_7] : memref<12x32xf32, #tpu.memory_space<vmem>>, vector<2x32xf32>
    tpu.vector_store %arg3[%c10, %c0_7], %8 {strides = array<i32>} : memref<12x32xf32, #tpu.memory_space<vmem>>, vector<2x32xf32>,
    %c0_8 = arith.constant 0 : index
    %c0_9 = arith.constant 0 : index
    %10 = vector.load %arg3[%c0_8, %c0_9] : memref<12x32xf32, #tpu.memory_space<vmem>>, vector<8x32xf32>
    %c1 = arith.constant 1 : index
    %c0_10 = arith.constant 0 : index
    %11 = vector.load %arg3[%c1, %c0_10] : memref<12x32xf32, #tpu.memory_space<vmem>>, vector<8x32xf32>
    %12 = arith.addf %10, %11 : vector<8x32xf32>
    %c2_11 = arith.constant 2 : index
    %c0_12 = arith.constant 0 : index
    %13 = vector.load %arg3[%c2_11, %c0_12] : memref<12x32xf32, #tpu.memory_space<vmem>>, vector<8x32xf32>
    %14 = arith.addf %12, %13 : vector<8x32xf32>
    %c3 = arith.constant 3 : index
    %c0_13 = arith.constant 0 : index
    %15 = vector.load %arg3[%c3, %c0_13] : memref<12x32xf32, #tpu.memory_space<vmem>>, vector<8x32xf32>
    %16 = arith.addf %14, %15 : vector<8x32xf32>
    %c4 = arith.constant 4 : index
    %c0_14 = arith.constant 0 : index
    %17 = vector.load %arg3[%c4, %c0_14] : memref<12x32xf32, #tpu.memory_space<vmem>>, vector<8x32xf32>
    %18 = arith.addf %16, %17 : vector<8x32xf32>
    %cst = arith.constant 2.000000e-01 : f32
    %19 = vector.broadcast %cst : f32 to vector<8x32xf32>
    %20 = arith.mulf %18, %19 : vector<8x32xf32>
    %c0_15 = arith.constant 0 : index
    %c0_16 = arith.constant 0 : index
    %21 = vector.load %arg2[%c0_15, %c0_16] : memref<8x32xf32, #tpu.memory_space<vmem>>, vector<8x32xf32>
    tpu.vector_store %arg2[%c0_15, %c0_16], %20 {strides = array<i32>} : memref<8x32xf32, #tpu.memory_space<vmem>>, vector<8x32xf32>,
    return
  }
  func.func @transform_0(%arg0: i32) -> (i32, i32) {
    %c0_i32 = arith.constant 0 : i32
    %c0_i32_0 = arith.constant 0 : i32
    return %c0_i32, %arg0 : i32, i32
  }
  func.func @transform_1(%arg0: i32) -> (i32, i32) {
    %c0_i32 = arith.constant 0 : i32
    %c0_i32_0 = arith.constant 0 : i32
    return %c0_i32, %arg0 : i32, i32
  }
}

</mosaic_0001>

<llo_original>
// kernel: tpu_custom_call.1
$region0: #{tpu_custom_call.1}
  #allocation0 [shape = 'u32[]', space=smem, size = 0x4, offset = 0x4, fixed_abs, tag = 'smem constant byte address 0x4 - core index']
  #allocation1 [shape = 'u32[72,128]{1,0:T(1,128)}', space=vmem, size = 0x9000, scoped, tag = 'internal scratch']
  #allocation2 [shape = 'f32[12,32]{1,0:T(8,128)}', space=vmem, size = 0x2000, scoped, tag = 'scratch operand']
  %s0 = inlined_call_operand.hbm [shape: f32[8,32], index: 0, kind: input, shape index: {}]
  %s1 = inlined_call_operand.hbm [shape: f32[8,32], index: 1, kind: output, shape index: {}]
  %s2 = sld [smem:[#allocation0]]
  $region18: #{tpu_custom_call.1} parent=0
    _
  %s4 = ssub.s32 1, %s2
  %s5 = scalar_select 0, %s4, %s2
  $region1: #{tpu_custom_call.1} parent=0
    #allocation3 [shape = 'u8[4096]{0}', space=vmem, size = 0x1000, scoped, tag = 'input window, operand 0, single buffered']
    #allocation4 [shape = 's32[1]{0}', space=sflag, size = 0x4, scoped, tag = 'scoped memory for tpu_custom_call.1']
    #allocation5 [shape = 's32[1]{0}', space=sflag, size = 0x4, scoped, tag = 'scoped memory for tpu_custom_call.1']
    #allocation6 [shape = 'u8[4096]{0}', space=vmem, size = 0x1000, scoped, tag = 'output window, operand 0, single buffered']
    %6 = vsyncpa [#allocation4], 0
    %7 = vsyncpa [#allocation5], 0
    // Predicated region
    $region2: #{tpu_custom_call.1} parent=1 // pred_check
      _
    $region3: #{tpu_custom_call.1} parent=1 // pred_check_branch
      %9 = sbr.rel (0) target = $region5
    $region4: #{tpu_custom_call.1} parent=1 // pred_region
      %11 = vsyncadd [#allocation4], 0
      %s13 = sshll.u32 %s0, 4
      %s14 = int_to_ptr.hbm [resolvable:$true] %s13
      %s15 = sshll.u32 [#allocation3], 4
      %s16 = int_to_ptr.vmem [resolvable:$true] %s15
      %18 = dma.hbm_to_vmem [thread:$0]  %s14, 128, %s16, [#allocation4]
    $region5: #{tpu_custom_call.1} parent=1 // pred_fallthru
      _
    // Predicated region
    $region6: #{tpu_custom_call.1} parent=1 // pred_check
      _
    $region7: #{tpu_custom_call.1} parent=1 // pred_check_branch
      %20 = sbr.rel (0) target = $region9
    $region8: #{tpu_custom_call.1} parent=1 // pred_region
      %22 = dma.done [#allocation4], 128
    $region9: #{tpu_custom_call.1} parent=1 // pred_fallthru
      _
    %v23 = vld [vmem:[#allocation3] sm:$0xff]
    %vm24 = vcmask 261120
    %25 = vst.msk [vmem:[#allocation2 + $0x2] sm:$0xff] %vm24, %v23
    %v26 = vld [vmem:[#allocation3] sm:$0x1]
    %v27 = vld [vmem:[#allocation3 + $0x7] sm:$0x1]
    %v28 = vperm.slane %v26, 0
    %vm29 = vcmask 254976
    %30 = vst.msk [vmem:[#allocation2] sm:$0x3] %vm29, %v28
    %v31 = vperm.slane %v27, 0
    %32 = vst.msk [vmem:[#allocation2 + $0xa] sm:$0x3] %vm29, %v31
    %v33 = vld [vmem:[#allocation2] sm:$0xff]
    %v34 = vld [vmem:[#allocation2 + $0x1] sm:$0xff]
    %v35 = vadd.f32 %v33, %v34
    %v36 = vld [vmem:[#allocation2 + $0x2] sm:$0xff]
    %v37 = vadd.f32 %v35, %v36
    %v38 = vld [vmem:[#allocation2 + $0x3] sm:$0xff]
    %v39 = vadd.f32 %v37, %v38
    %v40 = vld [vmem:[#allocation2 + $0x4] sm:$0xff]
    %v41 = vadd.f32 %v39, %v40
    %v42 = vmul.f32 %v41, 0.2
    %43 = vst.msk [vmem:[#allocation6] sm:$0xff] %vm24, %v42
    // Predicated region
    $region10: #{tpu_custom_call.1} parent=1 // pred_check
      _
    $region11: #{tpu_custom_call.1} parent=1 // pred_check_branch
      %45 = sbr.rel (0) target = $region13
    $region12: #{tpu_custom_call.1} parent=1 // pred_region
      %47 = vsyncadd [#allocation5], 0
      %s49 = sshll.u32 [#allocation6], 4
      %s50 = int_to_ptr.vmem [resolvable:$true] %s49
      %s51 = sshll.u32 %s1, 4
      %s52 = int_to_ptr.hbm [resolvable:$true] %s51
      %54 = dma.vmem_to_hbm [thread:$0]  %s50, 128, %s52, [#allocation5]
    $region13: #{tpu_custom_call.1} parent=1 // pred_fallthru
      _
    // Predicated region
    $region14: #{tpu_custom_call.1} parent=1 // pred_check
      _
    $region15: #{tpu_custom_call.1} parent=1 // pred_check_branch
      %56 = sbr.rel (0) target = $region17
    $region16: #{tpu_custom_call.1} parent=1 // pred_region
      %58 = dma.done [#allocation5], 128
    $region17: #{tpu_custom_call.1} parent=1 // pred_fallthru
      _
    %59 = vsyncpa [#allocation4], 1
    %60 = vsyncpa [#allocation5], 1

</llo_original>
